<compile_context>
chip_gen: v6e
topology: v6e:2x2x1
jax: 0.10.0
libtpu: 0.0.40
codegen_flags: <defaults>
</compile_context>

<pallas_src>
from functools import partial

import jax
import jax.numpy as jnp
from jax import lax
from jax.experimental import pallas as pl
from jax.experimental.pallas import tpu as pltpu


def _patch_embed_kernel(p_ref, w_ref, b_ref, g_ref, beta_ref, o_ref, *,
                        use_norm: bool, eps: float, embed_dim: int):
    # p_ref:    (TM, K)  patches row-tile
    # w_ref:    (K, Ep)  projection weight (resident across grid steps)
    # b_ref:    (1, Ep)  bias, f32, zero-padded beyond embed_dim
    # g_ref:    (1, Ep)  LayerNorm gamma, f32, zero-padded
    # beta_ref: (1, Ep)  LayerNorm beta, f32, zero-padded
    # o_ref:    (TM, Ep) output row-tile (lane-dense, Ep multiple of 128)
    acc = jnp.dot(p_ref[...], w_ref[...], preferred_element_type=jnp.float32)
    acc = acc + b_ref[...]
    if use_norm:
        ep = acc.shape[-1]
        inv_e = 1.0 / embed_dim
        # Padded columns (>= embed_dim) are exactly zero (zero-padded weight and
        # bias), so the plain sum gives the correct mean over embed_dim columns.
        mean = jnp.sum(acc, axis=-1, keepdims=True) * inv_e
        if ep != embed_dim:
            col = lax.broadcasted_iota(jnp.int32, acc.shape, dimension=1)
            centered = jnp.where(col < embed_dim, acc - mean, 0.0)
        else:
            centered = acc - mean
        var = jnp.sum(centered * centered, axis=-1, keepdims=True) * inv_e
        acc = centered * lax.rsqrt(var + eps)
        acc = acc * g_ref[...] + beta_ref[...]   # padded cols -> 0 (gamma/beta = 0)
    o_ref[...] = acc.astype(o_ref.dtype)


def patch_embed(x, weight, bias, gamma=None, beta=None, *, patch_size=4,
                use_norm=False, eps=1e-5, tile_m=512):
    """Forward pass of PatchEmbed.

    x:          [B, C, H, W]   (NCHW, like PyTorch)
    weight:     [E, C, P, P]   (Conv2d weight, OIHW)
    bias:       [E]
    gamma/beta: [E]            (LayerNorm affine; used only if use_norm=True)
    returns:    [B, E, Hp, Wp] (NCHW, like the PyTorch module)
    """
    B, C, H, W = x.shape
    P = patch_size
    E = weight.shape[0]

    # Same padding semantics as F.pad in the module: pad W then H on right/bottom.
    pad_w = (-W) % P
    pad_h = (-H) % P
    if pad_w or pad_h:
        x = jnp.pad(x, ((0, 0), (0, 0), (0, pad_h), (0, pad_w)))
    Hp, Wp = (H + pad_h) // P, (W + pad_w) // P

    # Glue: stride-P conv == per-patch flatten + matmul.
    # [B, C, Hp, P, Wp, P] -> [B, Hp, Wp, C, P, P] -> [M, K]
    patches = (x.reshape(B, C, Hp, P, Wp, P)
                .transpose(0, 2, 4, 1, 3, 5)
                .reshape(B * Hp * Wp, C * P * P))
    M, K = patches.shape

    # Lane-dense output: pad embed_dim up to a multiple of 128.
    Ep = ((E + 127) // 128) * 128

    # Row tile: up to tile_m rows, multiple of 8; pad M up so every block is full.
    TM = min(tile_m, ((M + 7) // 8) * 8)
    Mp = ((M + TM - 1) // TM) * TM
    if Mp != M:
        patches = jnp.pad(patches, ((0, Mp - M), (0, 0)))

    # Conv2d contraction order: [E, C*P*P]^T -> [K, E]; zero-pad extra columns.
    w2d = weight.reshape(E, K).T
    if Ep != E:
        w2d = jnp.pad(w2d, ((0, 0), (0, Ep - E)))

    def _row_f32(v):
        if v is None:
            return jnp.zeros((1, Ep), jnp.float32)
        v = v.astype(jnp.float32).reshape(1, E)
        return jnp.pad(v, ((0, 0), (0, Ep - E))) if Ep != E else v

    bias_r = _row_f32(bias)
    gamma_r = _row_f32(gamma if use_norm else None)
    beta_r = _row_f32(beta if use_norm else None)

    kernel = partial(_patch_embed_kernel, use_norm=use_norm, eps=eps, embed_dim=E)
    out = pl.pallas_call(
        kernel,
        out_shape=jax.ShapeDtypeStruct((Mp, Ep), x.dtype),
        grid=(Mp // TM,),
        in_specs=[
            pl.BlockSpec((TM, K), lambda i: (i, 0)),   # patches: streamed row-tiles
            pl.BlockSpec((K, Ep), lambda i: (0, 0)),   # weight: resident
            pl.BlockSpec((1, Ep), lambda i: (0, 0)),   # bias
            pl.BlockSpec((1, Ep), lambda i: (0, 0)),   # gamma
            pl.BlockSpec((1, Ep), lambda i: (0, 0)),   # beta
        ],
        out_specs=pl.BlockSpec((TM, Ep), lambda i: (i, 0)),
        compiler_params=pltpu.CompilerParams(
            dimension_semantics=("parallel",)),
    )(patches, w2d, bias_r, gamma_r, beta_r)

    # Drop M/E padding, then [M, E] -> [B, Hp, Wp, E] -> NCHW [B, E, Hp, Wp].
    out = out[:M, :E]
    return out.reshape(B, Hp, Wp, E).transpose(0, 3, 1, 2)


def _reference(x, weight, bias, gamma, beta, *, patch_size=4, use_norm=True):
    """Pure-JAX reference mirroring the PyTorch forward (sanity check)."""
    B, C, H, W = x.shape
    P = patch_size
    pad_w = (-W) % P
    pad_h = (-H) % P
    if pad_w or pad_h:
        x = jnp.pad(x, ((0, 0), (0, 0), (0, pad_h), (0, pad_w)))
    y = jax.lax.conv_general_dilated(
        x, weight, window_strides=(P, P), padding="VALID",
        dimension_numbers=("NCHW", "OIHW", "NCHW"))
    y = y + bias[None, :, None, None]
    if use_norm:
        Bn, E, Hp, Wp = y.shape
        t = y.reshape(Bn, E, Hp * Wp).transpose(0, 2, 1)  # [B, L, E]
        mean = jnp.mean(t, axis=-1, keepdims=True)
        var = jnp.mean((t - mean) ** 2, axis=-1, keepdims=True)
        t = (t - mean) / jnp.sqrt(var + 1e-5) * gamma + beta
        y = t.transpose(0, 2, 1).reshape(Bn, E, Hp, Wp)
    return y


if __name__ == "__main__":
    # Module config: patch_size=4, in_chans=3, embed_dim=96 (module defaults).
    B, C, H, W = 2, 3, 16, 16
    P, E = 4, 96

    key = jax.random.PRNGKey(0)
    kx, kw, kb, kg, kbe = jax.random.split(key, 5)
    x = jax.random.normal(kx, (B, C, H, W), dtype=jnp.float32)
    weight = jax.random.normal(kw, (E, C, P, P), dtype=jnp.float32) * 0.02
    bias = jax.random.normal(kb, (E,), dtype=jnp.float32) * 0.02
    gamma = 1.0 + 0.1 * jax.random.normal(kg, (E,), dtype=jnp.float32)
    beta = 0.1 * jax.random.normal(kbe, (E,), dtype=jnp.float32)

    # Fused LayerNorm path (norm_layer=nn.LayerNorm).
    out = patch_embed(x, weight, bias, gamma, beta, patch_size=P, use_norm=True)
    out = jax.block_until_ready(out)
    ref = _reference(x, weight, bias, gamma, beta, patch_size=P, use_norm=True)
    assert out.shape == (B, E, H // P, W // P), out.shape
    assert jnp.allclose(out, ref, atol=1e-4, rtol=1e-4), "mismatch (norm path)"

    # Default module behavior (norm_layer=None).
    out2 = patch_embed(x, weight, bias, gamma, beta, patch_size=P, use_norm=False)
    out2 = jax.block_until_ready(out2)
    ref2 = _reference(x, weight, bias, gamma, beta, patch_size=P, use_norm=False)
    assert jnp.allclose(out2, ref2, atol=1e-4, rtol=1e-4), "mismatch (no-norm path)"

    print("KERNEL_OK")
</pallas_src>

<mosaic_0001>
module attributes {stable_mosaic.version = 11 : i64} {
  func.func @_patch_embed_kernel(%arg0: i32, %arg1: memref<32x48xf32, #tpu.memory_space<vmem>>, %arg2: memref<48x128xf32, #tpu.memory_space<vmem>>, %arg3: memref<1x128xf32, #tpu.memory_space<vmem>>, %arg4: memref<1x128xf32, #tpu.memory_space<vmem>>, %arg5: memref<1x128xf32, #tpu.memory_space<vmem>>, %arg6: memref<32x128xf32, #tpu.memory_space<vmem>>) attributes {dimension_semantics = [#tpu.dimension_semantics<parallel>], iteration_bounds = array<i64: 1>, scalar_prefetch = 0 : i64, scratch_operands = 0 : i64, tpu.core_type = #tpu.core_type<tc>, window_params = [{transform_indices = @transform_0, window_bounds = array<i64: 32, 48>}, {pipeline_mode = #tpu.pipeline_mode<synchronous>, transform_indices = @transform_1, window_bounds = array<i64: 48, 128>}, {pipeline_mode = #tpu.pipeline_mode<synchronous>, transform_indices = @transform_2, window_bounds = array<i64: 1, 128>}, {pipeline_mode = #tpu.pipeline_mode<synchronous>, transform_indices = @transform_3, window_bounds = array<i64: 1, 128>}, {pipeline_mode = #tpu.pipeline_mode<synchronous>, transform_indices = @transform_4, window_bounds = array<i64: 1, 128>}, {transform_indices = @transform_5, window_bounds = array<i64: 32, 128>}]} {
    %c0 = arith.constant 0 : index
    %c0_0 = arith.constant 0 : index
    %0 = vector.load %arg1[%c0, %c0_0] : memref<32x48xf32, #tpu.memory_space<vmem>>, vector<32x48xf32>
    %c0_1 = arith.constant 0 : index
    %c0_2 = arith.constant 0 : index
    %1 = vector.load %arg2[%c0_1, %c0_2] : memref<48x128xf32, #tpu.memory_space<vmem>>, vector<48x128xf32>
    %cst = arith.constant dense<0.000000e+00> : vector<32x128xf32>
    %2 = tpu.matmul %0, %1, %cst {dimension_numbers = #tpu.dot_dimension_numbers<[1], [0], [0], [1], [0, 0, 1, 1], [], []>} : vector<32x48xf32>, vector<48x128xf32>, vector<32x128xf32> -> vector<32x128xf32>
    %c0_3 = arith.constant 0 : index
    %c0_4 = arith.constant 0 : index
    %3 = vector.load %arg3[%c0_3, %c0_4] : memref<1x128xf32, #tpu.memory_space<vmem>>, vector<1x128xf32>
    %4 = vector.broadcast %3 : vector<1x128xf32> to vector<32x128xf32>
    %5 = arith.addf %2, %4 : vector<32x128xf32>
    %cst_5 = arith.constant dense<0.000000e+00> : vector<32xf32>
    %6 = vector.multi_reduction <add>, %5, %cst_5 [1] : vector<32x128xf32> to vector<32xf32>
    %7 = vector.shape_cast %6 : vector<32xf32> to vector<32x1xf32>
    %cst_6 = arith.constant 0.010416667 : f32
    %8 = vector.broadcast %cst_6 : f32 to vector<32x1xf32>
    %9 = arith.mulf %7, %8 : vector<32x1xf32>
    %10 = tpu.iota {dimensions = array<i32: 1>} : vector<32x128xi32>
    %c96_i32 = arith.constant 96 : i32
    %11 = vector.broadcast %c96_i32 : i32 to vector<32x128xi32>
    %12 = arith.cmpi slt, %10, %11 : vector<32x128xi32>
    %13 = vector.broadcast %9 : vector<32x1xf32> to vector<32x128xf32>
    %14 = arith.subf %5, %13 : vector<32x128xf32>
    %cst_7 = arith.constant 0.000000e+00 : f32
    %15 = vector.broadcast %cst_7 : f32 to vector<32x128xf32>
    %16 = arith.select %12, %14, %15 : vector<32x128xi1>, vector<32x128xf32>
    %17 = arith.mulf %16, %16 : vector<32x128xf32>
    %cst_8 = arith.constant dense<0.000000e+00> : vector<32xf32>
    %18 = vector.multi_reduction <add>, %17, %cst_8 [1] : vector<32x128xf32> to vector<32xf32>
    %19 = vector.shape_cast %18 : vector<32xf32> to vector<32x1xf32>
    %cst_9 = arith.constant 0.010416667 : f32
    %20 = vector.broadcast %cst_9 : f32 to vector<32x1xf32>
    %21 = arith.mulf %19, %20 : vector<32x1xf32>
    %cst_10 = arith.constant 9.99999974E-6 : f32
    %22 = vector.broadcast %cst_10 : f32 to vector<32x1xf32>
    %23 = arith.addf %21, %22 : vector<32x1xf32>
    %24 = math.rsqrt %23 : vector<32x1xf32>
    %25 = vector.broadcast %24 : vector<32x1xf32> to vector<32x128xf32>
    %26 = arith.mulf %16, %25 : vector<32x128xf32>
    %c0_11 = arith.constant 0 : index
    %c0_12 = arith.constant 0 : index
    %27 = vector.load %arg4[%c0_11, %c0_12] : memref<1x128xf32, #tpu.memory_space<vmem>>, vector<1x128xf32>
    %28 = vector.broadcast %27 : vector<1x128xf32> to vector<32x128xf32>
    %29 = arith.mulf %26, %28 : vector<32x128xf32>
    %c0_13 = arith.constant 0 : index
    %c0_14 = arith.constant 0 : index
    %30 = vector.load %arg5[%c0_13, %c0_14] : memref<1x128xf32, #tpu.memory_space<vmem>>, vector<1x128xf32>
    %31 = vector.broadcast %30 : vector<1x128xf32> to vector<32x128xf32>
    %32 = arith.addf %29, %31 : vector<32x128xf32>
    %c0_15 = arith.constant 0 : index
    %c0_16 = arith.constant 0 : index
    %33 = vector.load %arg6[%c0_15, %c0_16] : memref<32x128xf32, #tpu.memory_space<vmem>>, vector<32x128xf32>
    tpu.vector_store %arg6[%c0_15, %c0_16], %32 {strides = array<i32>} : memref<32x128xf32, #tpu.memory_space<vmem>>, vector<32x128xf32>,
    return
  }
  func.func @transform_0(%arg0: i32) -> (i32, i32) {
    %c0_i32 = arith.constant 0 : i32
    %c0_i32_0 = arith.constant 0 : i32
    return %arg0, %c0_i32 : i32, i32
  }
  func.func @transform_1(%arg0: i32) -> (i32, i32) {
    %c0_i32 = arith.constant 0 : i32
    %c0_i32_0 = arith.constant 0 : i32
    %c0_i32_1 = arith.constant 0 : i32
    return %c0_i32, %c0_i32_0 : i32, i32
  }
  func.func @transform_2(%arg0: i32) -> (i32, i32) {
    %c0_i32 = arith.constant 0 : i32
    %c0_i32_0 = arith.constant 0 : i32
    %c0_i32_1 = arith.constant 0 : i32
    return %c0_i32, %c0_i32_0 : i32, i32
  }
  func.func @transform_3(%arg0: i32) -> (i32, i32) {
    %c0_i32 = arith.constant 0 : i32
    %c0_i32_0 = arith.constant 0 : i32
    %c0_i32_1 = arith.constant 0 : i32
    return %c0_i32, %c0_i32_0 : i32, i32
  }
  func.func @transform_4(%arg0: i32) -> (i32, i32) {
    %c0_i32 = arith.constant 0 : i32
    %c0_i32_0 = arith.constant 0 : i32
    %c0_i32_1 = arith.constant 0 : i32
    return %c0_i32, %c0_i32_0 : i32, i32
  }
  func.func @transform_5(%arg0: i32) -> (i32, i32) {
    %c0_i32 = arith.constant 0 : i32
    %c0_i32_0 = arith.constant 0 : i32
    return %arg0, %c0_i32 : i32, i32
  }
}

</mosaic_0001>

<llo_original>
// kernel: tpu_custom_call.1
$region0: #{tpu_custom_call.1}
  #allocation0 [shape = 'u32[]', space=smem, size = 0x4, offset = 0x4, fixed_abs, tag = 'smem constant byte address 0x4 - core index']
  #allocation1 [shape = 'u32[144,128]{1,0:T(1,128)}', space=vmem, size = 0x12000, scoped, tag = 'internal scratch']
  %s0 = inlined_call_operand.hbm [shape: f32[32,48], index: 0, kind: input, shape index: {}]
  %s1 = inlined_call_operand.hbm [shape: f32[48,128], index: 1, kind: input, shape index: {}]
  %s2 = inlined_call_operand.vmem [shape: f32[1,128], index: 2, kind: input, shape index: {}]
  %s3 = inlined_call_operand.vmem [shape: f32[1,128], index: 3, kind: input, shape index: {}]
  %s4 = inlined_call_operand.vmem [shape: f32[1,128], index: 4, kind: input, shape index: {}]
  %s5 = inlined_call_operand.hbm [shape: f32[32,128], index: 5, kind: output, shape index: {}]
  %s6 = sld [smem:[#allocation0]]
  $region38: #{tpu_custom_call.1} parent=0
    _
  %s8 = ssub.s32 1, %s6
  %s9 = scalar_select 0, %s8, %s6
  $region1: #{tpu_custom_call.1} parent=0
    #allocation2 [shape = 'u8[16384]{0}', space=vmem, size = 0x4000, scoped, tag = 'input window, operand 0, single buffered']
    #allocation3 [shape = 's32[1]{0}', space=sflag, size = 0x4, scoped, tag = 'scoped memory for tpu_custom_call.1']
    #allocation4 [shape = 's32[1]{0}', space=sflag, size = 0x4, scoped, tag = 'scoped memory for tpu_custom_call.1']
    #allocation5 [shape = 'u8[24576]{0}', space=vmem, size = 0x6000, scoped, tag = 'input window, operand 1, single buffered']
    #allocation6 [shape = 's32[1]{0}', space=sflag, size = 0x4, scoped, tag = 'scoped memory for tpu_custom_call.1']
    #allocation7 [shape = 'u8[16384]{0}', space=vmem, size = 0x4000, scoped, tag = 'output window, operand 0, single buffered']
    %10 = vsyncpa [#allocation3], 0
    %11 = vsyncpa [#allocation6], 0
    %12 = vsyncpa [#allocation4], 0
    // Predicated region
    $region2: #{tpu_custom_call.1} parent=1 // pred_check
      _
    $region3: #{tpu_custom_call.1} parent=1 // pred_check_branch
      %14 = sbr.rel (0) target = $region5
    $region4: #{tpu_custom_call.1} parent=1 // pred_region
      %s16 = ssub.s32 512, 512
      %17 = vsyncadd [#allocation3], %s16
      %s18 = sshll.u32 [#allocation2], 4
      %s19 = int_to_ptr.vmem [resolvable:$true] %s18
      %24 = dma.hbm_to_vmem [thread:$0]  %s0, 512, %s19, [#allocation3], 128, 128, 8
    $region5: #{tpu_custom_call.1} parent=1 // pred_fallthru
      _
    // Predicated region
    $region6: #{tpu_custom_call.1} parent=1 // pred_check
      _
    $region7: #{tpu_custom_call.1} parent=1 // pred_check_branch
      %26 = sbr.rel (0) target = $region9
    $region8: #{tpu_custom_call.1} parent=1 // pred_region
      %s28 = ssub.s32 768, 768
      %29 = vsyncadd [#allocation6], %s28
      %s30 = sshll.u32 [#allocation5], 4
      %s31 = int_to_ptr.vmem [resolvable:$true] %s30
      %36 = dma.hbm_to_vmem [thread:$0]  %s1, 768, %s31, [#allocation6], 128, 128, 8
    $region9: #{tpu_custom_call.1} parent=1 // pred_fallthru
      _
    // Predicated region
    $region10: #{tpu_custom_call.1} parent=1 // pred_check
      _
    $region11: #{tpu_custom_call.1} parent=1 // pred_check_branch
      %38 = sbr.rel (0) target = $region13
    $region12: #{tpu_custom_call.1} parent=1 // pred_region
      _
    $region13: #{tpu_custom_call.1} parent=1 // pred_fallthru
      _
    // Predicated region
    $region14: #{tpu_custom_call.1} parent=1 // pred_check
      _
    $region15: #{tpu_custom_call.1} parent=1 // pred_check_branch
      %40 = sbr.rel (0) target = $region17
    $region16: #{tpu_custom_call.1} parent=1 // pred_region
      _
    $region17: #{tpu_custom_call.1} parent=1 // pred_fallthru
      _
    // Predicated region
    $region18: #{tpu_custom_call.1} parent=1 // pred_check
      _
    $region19: #{tpu_custom_call.1} parent=1 // pred_check_branch
      %42 = sbr.rel (0) target = $region21
    $region20: #{tpu_custom_call.1} parent=1 // pred_region
      _
    $region21: #{tpu_custom_call.1} parent=1 // pred_fallthru
      _
    // Predicated region
    $region22: #{tpu_custom_call.1} parent=1 // pred_check
      _
    $region23: #{tpu_custom_call.1} parent=1 // pred_check_branch
      %44 = sbr.rel (0) target = $region25
    $region24: #{tpu_custom_call.1} parent=1 // pred_region
      %45 = dma.done [#allocation3], 512
    $region25: #{tpu_custom_call.1} parent=1 // pred_fallthru
      _
    // Predicated region
    $region26: #{tpu_custom_call.1} parent=1 // pred_check
      _
    $region27: #{tpu_custom_call.1} parent=1 // pred_check_branch
      %47 = sbr.rel (0) target = $region29
    $region28: #{tpu_custom_call.1} parent=1 // pred_region
      %48 = dma.done [#allocation6], 768
    $region29: #{tpu_custom_call.1} parent=1 // pred_fallthru
      _
    %v49 = vld [vmem:[#allocation2] sm:$0xff]
    %v50 = vld [vmem:[#allocation2 + $0x8] sm:$0xff]
    %v51 = vld [vmem:[#allocation2 + $0x10] sm:$0xff]
    %v52 = vld [vmem:[#allocation2 + $0x18] sm:$0xff]
    %v53 = vld [vmem:[#allocation5] sm:$0xff]
    %v54 = vld [vmem:[#allocation5 + $0x8] sm:$0xff]
    %v55 = vld [vmem:[#allocation5 + $0x10] sm:$0xff]
    %v56 = vld [vmem:[#allocation5 + $0x18] sm:$0xff]
    %v57 = vld [vmem:[#allocation5 + $0x20] sm:$0xff]
    %v58 = vld [vmem:[#allocation5 + $0x28] sm:$0xff]
    %v59 = vld [vmem:[%s2] sm:$0x1]
    %v61 = vlaneseq
    %v62 = vshrl.u32 %v61, 7
    %v63 = vsub.s32 0, %v62
    %v64 = vrot.slane %v59, %v63
    %vm66 = vcmask 392192
    %v68 = vsel %vm66, %v49, 0
    %v71 = vsel %vm66, %v50, 0
    %v74 = vsel %vm66, %v51, 0
    %v77 = vsel %vm66, %v52, 0
    %79 = vmatprep.subr.mxu0 0.0
    %80 = vmatpush1.msra.mxu0 0.0
    %81 = vmatprep.subr.mxu0 0.0
    %82 = vmatpush1.msra.mxu0 0.0
    %83 = vmatprep.subr.mxu0 0.0
    %84 = vmatpush1.msra.mxu0 0.0
    %85 = vmatprep.subr.mxu0 0.0
    %86 = vmatpush1.msra.mxu0 0.0
    %87 = vmatprep.subr.mxu0 0.0
    %88 = vmatpush1.msra.mxu0 0.0
    %89 = vmatprep.subr.mxu0 0.0
    %90 = vmatpush1.msra.mxu0 0.0
    %91 = vmatprep.subr.mxu0 0.0
    %92 = vmatpush1.msra.mxu0 0.0
    %93 = vmatprep.subr.mxu0 0.0
    %94 = vmatpush1.msra.mxu0 0.0
    %95 = vmatprep.subr.mxu0 0.0
    %96 = vmatpush1.msra.mxu0 0.0
    %97 = vmatprep.subr.mxu0 0.0
    %98 = vmatpush1.msra.mxu0 0.0
    %99 = vmatprep.subr.mxu0 0.0
    %100 = vmatpush1.msra.mxu0 %v58
    %101 = vmatprep.subr.mxu0 0.0
    %102 = vmatpush1.msra.mxu0 %v57
    %103 = vmatprep.subr.mxu0 0.0
    %104 = vmatpush1.msra.mxu0 %v56
    %105 = vmatprep.subr.mxu0 0.0
    %106 = vmatpush1.msra.mxu0 %v55
    %107 = vmatprep.subr.mxu0 0.0
    %108 = vmatpush1.msra.mxu0 %v54
    %109 = vmatprep.subr.mxu0 0.0
    %110 = vmatpush1.msra.mxu0 %v53
    %111 = vmatprep.subr.mxu0 0.0
    %112 = vmatpush2.msra.mxu0 0.0
    %113 = vmatprep.subr.mxu0 0.0
    %114 = vmatpush2.msra.mxu0 0.0
    %115 = vmatprep.subr.mxu0 0.0
    %116 = vmatpush2.msra.mxu0 0.0
    %117 = vmatprep.subr.mxu0 0.0
    %118 = vmatpush2.msra.mxu0 0.0
    %119 = vmatprep.subr.mxu0 0.0
    %120 = vmatpush2.msra.mxu0 0.0
    %121 = vmatprep.subr.mxu0 0.0
    %122 = vmatpush2.msra.mxu0 0.0
    %123 = vmatprep.subr.mxu0 0.0
    %124 = vmatpush2.msra.mxu0 0.0
    %125 = vmatprep.subr.mxu0 0.0
    %126 = vmatpush2.msra.mxu0 0.0
    %127 = vmatprep.subr.mxu0 0.0
    %128 = vmatpush2.msra.mxu0 0.0
    %129 = vmatprep.subr.mxu0 0.0
    %130 = vmatpush2.msra.mxu0 0.0
    %131 = vmatprep.subr.mxu0 0.0
    %132 = vmatpush2.msra.mxu0 0.0
    %133 = vmatprep.subr.mxu0 0.0
    %134 = vmatpush2.msra.mxu0 0.0
    %135 = vmatprep.subr.mxu0 0.0
    %136 = vmatpush2.msra.mxu0 0.0
    %137 = vmatprep.subr.mxu0 0.0
    %138 = vmatpush2.msra.mxu0 0.0
    %139 = vmatprep.subr.mxu0 0.0
    %140 = vmatpush2.msra.mxu0 0.0
    %141 = vmatprep.subr.mxu0 0.0
    %142 = vmatpush2.msra.mxu0 0.0
    %143 = vmatprep.mubr.f32.mxu0 0.0
    %144 = vmatmul.mubr.f32.gmra.mxu0 %v68
    %v145 = vpop.f32.mrf.mxu0
    %v146 = vadd.f32 %v64, %v145
    %v147 = vpop.f32.mrf.mxu0
    %148 = vmatprep.mubr.f32.mxu0 0.0
    %149 = vmatmul.mubr.f32.gmra.mxu0 %v71
    %v150 = vpop.f32.mrf.mxu0
    %v151 = vadd.f32 %v64, %v150
    %v152 = vpop.f32.mrf.mxu0
    %153 = vmatprep.mubr.f32.mxu0 0.0
    %154 = vmatmul.mubr.f32.gmra.mxu0 %v74
    %v155 = vpop.f32.mrf.mxu0
    %v156 = vadd.f32 %v64, %v155
    %v157 = vpop.f32.mrf.mxu0
    %158 = vmatprep.mubr.f32.mxu0 0.0
    %159 = vmatmul.mubr.f32.gmra.mxu0 %v77
    %v160 = vpop.f32.mrf.mxu0
    %v161 = vadd.f32 %v64, %v160
    %v162 = vpop.f32.mrf.mxu0
    %163 = vdwg.mxu0
    %164 = vadd.xlane.f32.xlu0 %v146
    %v165 = vpop.xlane.xlu0 %164
    %166 = vadd.xlane.f32.xlu0 %v151
    %v167 = vpop.xlane.xlu0 %166
    %168 = vadd.xlane.f32.xlu0 %v156
    %v169 = vpop.xlane.xlu0 %168
    %170 = vadd.xlane.f32.xlu0 %v161
    %v171 = vpop.xlane.xlu0 %170
    %v172 = vmul.f32 %v165, 0.010416667
    %v173 = vmul.f32 %v167, 0.010416667
    %v174 = vmul.f32 %v169, 0.010416667
    %v175 = vmul.f32 %v171, 0.010416667
    %v176 = vlaneseq
    %v177 = vand.u32 %v176, 127
    %vm178 = vcmp.lt.s32.totalorder %v177, 96
    %v179 = vsub.f32 %v146, %v172
    %v180 = vsub.f32 %v151, %v173
    %v181 = vsub.f32 %v156, %v174
    %v182 = vsub.f32 %v161, %v175
    %v183 = vsel %vm178, %v179, 0.0
    %v184 = vsel %vm178, %v180, 0.0
    %v185 = vsel %vm178, %v181, 0.0
    %v186 = vsel %vm178, %v182, 0.0
    %v187 = vmul.f32 %v183, %v183
    %v188 = vmul.f32 %v184, %v184
    %v189 = vmul.f32 %v185, %v185
    %v190 = vmul.f32 %v186, %v186
    %191 = vadd.xlane.f32.xlu0 %v187
    %v192 = vpop.xlane.xlu0 %191
    %193 = vadd.xlane.f32.xlu0 %v188
    %v194 = vpop.xlane.xlu0 %193
    %195 = vadd.xlane.f32.xlu0 %v189
    %v196 = vpop.xlane.xlu0 %195
    %197 = vadd.xlane.f32.xlu0 %v190
    %v198 = vpop.xlane.xlu0 %197
    %v199 = vmul.f32 %v192, 0.010416667
    %v200 = vmul.f32 %v194, 0.010416667
    %v201 = vmul.f32 %v196, 0.010416667
    %v202 = vmul.f32 %v198, 0.010416667
    %v203 = vadd.f32 %v199, 1e-05
    %v204 = vadd.f32 %v200, 1e-05
    %v205 = vadd.f32 %v201, 1e-05
    %v206 = vadd.f32 %v202, 1e-05
    %v207 = vrsqrt.pop %v203
    %v208 = vrsqrt.pop %v204
    %v209 = vrsqrt.pop %v205
    %v210 = vrsqrt.pop %v206
    %v211 = vmul.f32 %v183, %v207
    %v212 = vmul.f32 %v184, %v208
    %v213 = vmul.f32 %v185, %v209
    %v214 = vmul.f32 %v186, %v210
    %v215 = vld [vmem:[%s3] sm:$0x1]
    %v217 = vlaneseq
    %v218 = vshrl.u32 %v217, 7
    %v219 = vsub.s32 0, %v218
    %v220 = vrot.slane %v215, %v219
    %v222 = vmul.f32 %v211, %v220
    %v223 = vmul.f32 %v212, %v220
    %v224 = vmul.f32 %v213, %v220
    %v225 = vmul.f32 %v214, %v220
    %v226 = vld [vmem:[%s4] sm:$0x1]
    %v228 = vlaneseq
    %v229 = vshrl.u32 %v228, 7
    %v230 = vsub.s32 0, %v229
    %v231 = vrot.slane %v226, %v230
    %v233 = vadd.f32 %v222, %v231
    %v234 = vadd.f32 %v223, %v231
    %v235 = vadd.f32 %v224, %v231
    %v236 = vadd.f32 %v225, %v231
    %237 = vst [vmem:[#allocation7] sm:$0xff] %v233
    %238 = vst [vmem:[#allocation7 + $0x8] sm:$0xff] %v234
    %239 = vst [vmem:[#allocation7 + $0x10] sm:$0xff] %v235
    %240 = vst [vmem:[#allocation7 + $0x18] sm:$0xff] %v236
    // Predicated region
    $region30: #{tpu_custom_call.1} parent=1 // pred_check
      _
    $region31: #{tpu_custom_call.1} parent=1 // pred_check_branch
      %242 = sbr.rel (0) target = $region33
    $region32: #{tpu_custom_call.1} parent=1 // pred_region
      %s244 = ssub.s32 512, 512
      %245 = vsyncadd [#allocation4], %s244
      %s246 = sshll.u32 [#allocation7], 4
      %s247 = int_to_ptr.vmem [resolvable:$true] %s246
      %252 = dma.vmem_to_hbm [thread:$0]  %s247, 512, %s5, [#allocation4], 128, 128, 8
    $region33: #{tpu_custom_call.1} parent=1 // pred_fallthru
      _
    // Predicated region
    $region34: #{tpu_custom_call.1} parent=1 // pred_check
      _
    $region35: #{tpu_custom_call.1} parent=1 // pred_check_branch
      %254 = sbr.rel (0) target = $region37
    $region36: #{tpu_custom_call.1} parent=1 // pred_region
      %255 = dma.done [#allocation4], 512
    $region37: #{tpu_custom_call.1} parent=1 // pred_fallthru
      _
    %256 = vsyncpa [#allocation3], 1
    %257 = vsyncpa [#allocation6], 1
    %258 = vsyncpa [#allocation4], 1

</llo_original>
